<compile_context>
chip_gen: v5e
topology: v5e:2x2
jax: 0.10.0
libtpu: 0.0.40
codegen_flags: <defaults>
</compile_context>

<pallas_src>
import functools

import jax
import jax.numpy as jnp
from jax.experimental import pallas as pl
from jax.experimental.pallas import tpu as pltpu

EPS = 1e-3


def _vmem_budget_bytes():
    """Scoped-VMEM budget with headroom (generation-aware, safe fallback)."""
    cap = 64 << 20                        # conservative default (v7x physical)
    try:
        info = pltpu.get_tpu_info()
        cap = int(getattr(info, "vmem_capacity_bytes", cap) or cap)
    except Exception:
        pass
    # 48 MiB on v7x (64 MiB physical), capped at 96 MiB on v5e/v6e (128 MiB).
    return min((cap * 3) // 4, 96 << 20)


def _choose_hw_tile(hw, c, target_block_bytes):
    """Lane-dense (multiple-of-128) tile of the spatial axis.

    Prefers a divisor of hw (no tail).  Otherwise returns the largest
    multiple of 128 within the byte budget; the caller then uses a
    cdiv grid with a masked tail tile (never a full-row fallback that
    could blow VMEM).
    """
    # Budget in f32 elements per row (conservative for sub-32-bit inputs,
    # since in-kernel math materializes f32 temporaries at block size).
    max_lanes = max(128, (target_block_bytes // max(1, c * 4)) // 128 * 128)
    if hw <= max_lanes:
        return hw                         # full spatial extent — always legal
    for t in range(max_lanes, 127, -128):
        if hw % t == 0:
            return t                      # clean divisor, no tail
    return max_lanes                      # cdiv grid + masked tail


# --------------------------------------------------------------------------
# Fused single-pass kernel (whole tensor resident in VMEM).
# --------------------------------------------------------------------------
def _bn_prelu_fused_kernel(x_ref, gamma_ref, beta_ref, alpha_ref, o_ref, *,
                           inv_m):
    x = x_ref[...].astype(jnp.float32)                    # (N, C, HW)
    s = jnp.sum(x, axis=(0, 2), keepdims=True)            # (1, C, 1)
    sq = jnp.sum(x * x, axis=(0, 2), keepdims=True)       # (1, C, 1)
    mean = s * inv_m
    var = jnp.maximum(sq * inv_m - mean * mean, 0.0)      # guard cancellation
    inv_std = jax.lax.rsqrt(var + EPS)
    scale = gamma_ref[...].astype(jnp.float32) * inv_std  # (1, C, 1)
    bias = beta_ref[...].astype(jnp.float32) - mean * scale
    alpha = alpha_ref[...].astype(jnp.float32)            # (C, 1)
    y = x * scale + bias
    o_ref[...] = jnp.where(y >= 0.0, y, y * alpha).astype(o_ref.dtype)


# --------------------------------------------------------------------------
# Two-pass kernels.
# --------------------------------------------------------------------------
def _bn_stats_kernel(x_ref, sum_ref, sq_ref, *, hw, thw, has_tail):
    """Per-(N, C) partial sums; accumulates over the spatial-tile axis."""
    t_i = pl.program_id(1)

    @pl.when(t_i == 0)
    def _():
        sum_ref[...] = jnp.zeros_like(sum_ref)
        sq_ref[...] = jnp.zeros_like(sq_ref)

    x = x_ref[...].astype(jnp.float32)                     # (C, thw)
    if has_tail:
        # Padded lanes of the final (partial) tile hold undefined data —
        # mask them out before reducing.
        lane = jax.lax.broadcasted_iota(jnp.int32, x.shape, 1)
        x = jnp.where(lane < (hw - t_i * thw), x, 0.0)
    sum_ref[...] += jnp.sum(x, axis=-1, keepdims=True)     # (C, 1)
    sq_ref[...] += jnp.sum(x * x, axis=-1, keepdims=True)  # (C, 1)


def _bn_prelu_apply_kernel(x_ref, params_ref, o_ref):
    # params packs {scale, bias, alpha*scale, alpha*bias}: two FMAs + select.
    x = x_ref[...].astype(jnp.float32)                     # (C, thw)
    p = params_ref[...]                                    # (C, 4) f32
    y_pos = x * p[:, 0:1] + p[:, 1:2]
    y_neg = x * p[:, 2:3] + p[:, 3:4]
    o_ref[...] = jnp.where(y_pos >= 0.0, y_pos, y_neg).astype(o_ref.dtype)


# --------------------------------------------------------------------------
# Wrapper.
# --------------------------------------------------------------------------
def bn_prelu(x_nchw, gamma, beta, alpha, *, force_two_pass=False,
             target_block_bytes=None):
    """BNPReLU forward. x_nchw: (N, C, H, W). gamma/beta/alpha: (C,)."""
    n, c, h, w = x_nchw.shape
    hw = h * w
    m = n * hw

    x3d = x_nchw.reshape(n, c, hw)        # free view, NCHW-native

    gamma2 = gamma.reshape(c, 1).astype(jnp.float32)
    beta2 = beta.reshape(c, 1).astype(jnp.float32)
    alpha2 = alpha.reshape(c, 1).astype(jnp.float32)

    budget = _vmem_budget_bytes()

    # ---- Fused single-pass path: 2x HBM traffic instead of 3x. ----
    x_f32_bytes = n * c * hw * 4
    if (not force_two_pass) and (5 * x_f32_bytes <= budget):
        out3d = pl.pallas_call(
            functools.partial(_bn_prelu_fused_kernel, inv_m=1.0 / m),
            out_shape=jax.ShapeDtypeStruct((n, c, hw), x_nchw.dtype),
            compiler_params=pltpu.CompilerParams(vmem_limit_bytes=budget),
        )(x3d, gamma2, beta2, alpha2)
        return out3d.reshape(n, c, h, w)

    # ---- Two-pass tiled path. ----
    if target_block_bytes is None:
        target_block_bytes = max(1 << 20, min(8 << 20, budget // 8))
    thw = _choose_hw_tile(hw, c, target_block_bytes)
    num_t = pl.cdiv(hw, thw)
    has_tail = (hw % thw) != 0

    x_spec = pl.BlockSpec((None, c, thw), lambda ni, ti: (ni, 0, ti))
    stat_spec = pl.BlockSpec((None, c, 1), lambda ni, ti: (ni, 0, 0))

    # Pass 1: per-N partial sums (N axis megacore-parallel on v7x, the
    # spatial-tile reduction axis is last / "arbitrary").
    psum, psq = pl.pallas_call(
        functools.partial(_bn_stats_kernel, hw=hw, thw=thw, has_tail=has_tail),
        out_shape=(jax.ShapeDtypeStruct((n, c, 1), jnp.float32),
                   jax.ShapeDtypeStruct((n, c, 1), jnp.float32)),
        grid=(n, num_t),
        in_specs=[x_spec],
        out_specs=(stat_spec, stat_spec),
        compiler_params=pltpu.CompilerParams(
            dimension_semantics=("parallel", "arbitrary"),
            vmem_limit_bytes=budget),
    )(x3d)

    # Tiny JAX epilogue (C-sized): fold stats + affine + PReLU slope into one
    # packed per-channel param array {scale, bias, alpha*scale, alpha*bias}.
    # TODO(synk): E[x^2]-E[x]^2 in f32 loses precision for large-mean /
    # tiny-variance channels vs PyTorch's centered computation.
    s = jnp.sum(psum, axis=0)             # (C, 1)
    sq = jnp.sum(psq, axis=0)             # (C, 1)
    mean = s * (1.0 / m)
    var = jnp.maximum(sq * (1.0 / m) - mean * mean, 0.0)
    inv_std = jax.lax.rsqrt(var + EPS)
    scale = gamma2 * inv_std
    bias = beta2 - mean * scale
    params = jnp.concatenate(
        [scale, bias, alpha2 * scale, alpha2 * bias], axis=1)   # (C, 4) f32

    params_spec = pl.BlockSpec((c, 4), lambda ni, ti: (0, 0))

    # Pass 2: y = x*scale + bias with per-channel PReLU.  Fully independent
    # tiles -> both grid axes parallel (megacore sharding).  The padded
    # region of a partial tail tile is discarded on writeback.
    out3d = pl.pallas_call(
        _bn_prelu_apply_kernel,
        out_shape=jax.ShapeDtypeStruct((n, c, hw), x_nchw.dtype),
        grid=(n, num_t),
        in_specs=[x_spec, params_spec],
        out_specs=x_spec,
        compiler_params=pltpu.CompilerParams(
            dimension_semantics=("parallel", "parallel"),
            vmem_limit_bytes=budget),
    )(x3d, params)

    return out3d.reshape(n, c, h, w)


def _reference(x_nchw, gamma, beta, alpha):
    x = x_nchw.astype(jnp.float32)
    mean = jnp.mean(x, axis=(0, 2, 3), keepdims=True)
    var = jnp.mean((x - mean) ** 2, axis=(0, 2, 3), keepdims=True)
    y = (x - mean) * jax.lax.rsqrt(var + EPS)
    y = y * gamma[None, :, None, None] + beta[None, :, None, None]
    a = alpha[None, :, None, None]
    return jnp.where(y >= 0, y, a * y).astype(x_nchw.dtype)


if __name__ == "__main__":
    key = jax.random.PRNGKey(0)
    k1, k2 = jax.random.split(key)
    n, c, h, w = 2, 4, 16, 16

    # PyTorch defaults: BatchNorm2d weight=1, bias=0; PReLU a=0.25 per channel.
    gamma = jnp.ones((c,), dtype=jnp.float32)
    beta = jnp.zeros((c,), dtype=jnp.float32)
    alpha = jnp.full((c,), 0.25, dtype=jnp.float32)

    # 1) Small shape -> fused single-pass path.
    x = jax.random.normal(k1, (n, c, h, w), dtype=jnp.float32)
    out = jax.block_until_ready(bn_prelu(x, gamma, beta, alpha))
    ref = _reference(x, gamma, beta, alpha)
    assert out.shape == (n, c, h, w)
    assert jnp.allclose(out, ref, atol=1e-4, rtol=1e-4)

    # 2) Force the tiled two-pass path on a non-128-multiple spatial extent
    #    (exercises the cdiv grid + lane-masked tail and partial writeback).
    x2 = jax.random.normal(k2, (n, c, 24, 24), dtype=jnp.float32) * 2.0 + 0.5
    out2 = jax.block_until_ready(
        bn_prelu(x2, gamma, beta, alpha,
                 force_two_pass=True, target_block_bytes=4096))
    ref2 = _reference(x2, gamma, beta, alpha)
    assert out2.shape == (n, c, 24, 24)
    assert jnp.allclose(out2, ref2, atol=1e-4, rtol=1e-4)

    print("KERNEL_OK")
</pallas_src>

<mosaic_0001>
module attributes {stable_mosaic.version = 11 : i64} {
  func.func @_bn_prelu_fused_kernel(%arg0: memref<2x4x256xf32, #tpu.memory_space<vmem>>, %arg1: memref<4x1xf32, #tpu.memory_space<vmem>>, %arg2: memref<4x1xf32, #tpu.memory_space<vmem>>, %arg3: memref<4x1xf32, #tpu.memory_space<vmem>>, %arg4: memref<2x4x256xf32, #tpu.memory_space<vmem>>) attributes {dimension_semantics = [], scalar_prefetch = 0 : i64, scratch_operands = 0 : i64, tpu.core_type = #tpu.core_type<tc>} {
    %c0 = arith.constant 0 : index
    %c0_0 = arith.constant 0 : index
    %c0_1 = arith.constant 0 : index
    %0 = vector.load %arg0[%c0, %c0_0, %c0_1] : memref<2x4x256xf32, #tpu.memory_space<vmem>>, vector<2x4x256xf32>
    %cst = arith.constant dense<0.000000e+00> : vector<4xf32>
    %1 = vector.multi_reduction <add>, %0, %cst [0, 2] : vector<2x4x256xf32> to vector<4xf32>
    %2 = vector.shape_cast %1 : vector<4xf32> to vector<1x4x1xf32>
    %3 = arith.mulf %0, %0 : vector<2x4x256xf32>
    %cst_2 = arith.constant dense<0.000000e+00> : vector<4xf32>
    %4 = vector.multi_reduction <add>, %3, %cst_2 [0, 2] : vector<2x4x256xf32> to vector<4xf32>
    %5 = vector.shape_cast %4 : vector<4xf32> to vector<1x4x1xf32>
    %cst_3 = arith.constant 0.001953125 : f32
    %6 = vector.broadcast %cst_3 : f32 to vector<1x4x1xf32>
    %7 = arith.mulf %2, %6 : vector<1x4x1xf32>
    %cst_4 = arith.constant 0.001953125 : f32
    %8 = vector.broadcast %cst_4 : f32 to vector<1x4x1xf32>
    %9 = arith.mulf %5, %8 : vector<1x4x1xf32>
    %10 = arith.mulf %7, %7 : vector<1x4x1xf32>
    %11 = arith.subf %9, %10 : vector<1x4x1xf32>
    %cst_5 = arith.constant 0.000000e+00 : f32
    %12 = vector.broadcast %cst_5 : f32 to vector<1x4x1xf32>
    %13 = arith.maximumf %11, %12 : vector<1x4x1xf32>
    %cst_6 = arith.constant 1.000000e-03 : f32
    %14 = vector.broadcast %cst_6 : f32 to vector<1x4x1xf32>
    %15 = arith.addf %13, %14 : vector<1x4x1xf32>
    %16 = math.rsqrt %15 : vector<1x4x1xf32>
    %c0_7 = arith.constant 0 : index
    %c0_8 = arith.constant 0 : index
    %17 = vector.load %arg1[%c0_7, %c0_8] : memref<4x1xf32, #tpu.memory_space<vmem>>, vector<4x1xf32>
    %18 = vector.shape_cast %17 : vector<4x1xf32> to vector<1x4x1xf32>
    %19 = arith.mulf %18, %16 : vector<1x4x1xf32>
    %c0_9 = arith.constant 0 : index
    %c0_10 = arith.constant 0 : index
    %20 = vector.load %arg2[%c0_9, %c0_10] : memref<4x1xf32, #tpu.memory_space<vmem>>, vector<4x1xf32>
    %21 = arith.mulf %7, %19 : vector<1x4x1xf32>
    %22 = vector.shape_cast %20 : vector<4x1xf32> to vector<1x4x1xf32>
    %23 = arith.subf %22, %21 : vector<1x4x1xf32>
    %c0_11 = arith.constant 0 : index
    %c0_12 = arith.constant 0 : index
    %24 = vector.load %arg3[%c0_11, %c0_12] : memref<4x1xf32, #tpu.memory_space<vmem>>, vector<4x1xf32>
    %25 = vector.broadcast %19 : vector<1x4x1xf32> to vector<2x4x256xf32>
    %26 = arith.mulf %0, %25 : vector<2x4x256xf32>
    %27 = vector.broadcast %23 : vector<1x4x1xf32> to vector<2x4x256xf32>
    %28 = arith.addf %26, %27 : vector<2x4x256xf32>
    %cst_13 = arith.constant 0.000000e+00 : f32
    %29 = vector.broadcast %cst_13 : f32 to vector<2x4x256xf32>
    %30 = arith.cmpf oge, %28, %29 : vector<2x4x256xf32>
    %31 = vector.shape_cast %24 : vector<4x1xf32> to vector<1x4x1xf32>
    %32 = vector.broadcast %31 : vector<1x4x1xf32> to vector<2x4x256xf32>
    %33 = arith.mulf %28, %32 : vector<2x4x256xf32>
    %34 = arith.select %30, %28, %33 : vector<2x4x256xi1>, vector<2x4x256xf32>
    %c0_14 = arith.constant 0 : index
    %c0_15 = arith.constant 0 : index
    %c0_16 = arith.constant 0 : index
    %35 = vector.load %arg4[%c0_14, %c0_15, %c0_16] : memref<2x4x256xf32, #tpu.memory_space<vmem>>, vector<2x4x256xf32>
    tpu.vector_store %arg4[%c0_14, %c0_15, %c0_16], %34 {strides = array<i32>} : memref<2x4x256xf32, #tpu.memory_space<vmem>>, vector<2x4x256xf32>,
    return
  }
}

</mosaic_0001>

<llo_original>
// kernel: tpu_custom_call.1
$region0: #{tpu_custom_call.1}
  #allocation0 [shape = 'u32[]', space=smem, size = 0x4, offset = 0x4, fixed_abs, tag = 'smem constant byte address 0x4 - core index']
  #allocation1 [shape = 'u32[72,128]{1,0:T(1,128)}', space=vmem, size = 0x9000, scoped, tag = 'internal scratch']
  %s0 = inlined_call_operand.hbm [shape: f32[2,4,256], index: 0, kind: input, shape index: {}]
  %s1 = inlined_call_operand.vmem [shape: f32[4,1], index: 1, kind: input, shape index: {}]
  %s2 = inlined_call_operand.vmem [shape: f32[4,1], index: 2, kind: input, shape index: {}]
  %s3 = inlined_call_operand.vmem [shape: f32[4,1], index: 3, kind: input, shape index: {}]
  %s4 = inlined_call_operand.hbm [shape: f32[2,4,256], index: 4, kind: output, shape index: {}]
  %s5 = sld [smem:[#allocation0]]
  $region30: #{tpu_custom_call.1} parent=0
    _
  %s7 = ssub.s32 1, %s5
  %s8 = scalar_select 0, %s7, %s5
  $region1: #{tpu_custom_call.1} parent=0
    #allocation2 [shape = 'u8[8192]{0}', space=vmem, size = 0x2000, scoped, tag = 'input window, operand 0, single buffered']
    #allocation3 [shape = 's32[1]{0}', space=sflag, size = 0x4, scoped, tag = 'scoped memory for tpu_custom_call.1']
    #allocation4 [shape = 's32[1]{0}', space=sflag, size = 0x4, scoped, tag = 'scoped memory for tpu_custom_call.1']
    #allocation5 [shape = 'u8[8192]{0}', space=vmem, size = 0x2000, scoped, tag = 'output window, operand 0, single buffered']
    %9 = vsyncpa [#allocation3], 0
    %10 = vsyncpa [#allocation4], 0
    // Predicated region
    $region2: #{tpu_custom_call.1} parent=1 // pred_check
      _
    $region3: #{tpu_custom_call.1} parent=1 // pred_check_branch
      %12 = sbr.rel (0) target = $region5
    $region4: #{tpu_custom_call.1} parent=1 // pred_region
      %14 = vsyncadd [#allocation3], 0
      %s15 = sshll.u32 %s0, 4
      %s16 = int_to_ptr.hbm [resolvable:$true] %s15
      %s17 = sshll.u32 [#allocation2], 4
      %s18 = int_to_ptr.vmem [resolvable:$true] %s17
      %23 = dma.hbm_to_vmem [thread:$0]  %s16, 256, %s18, [#allocation3], 128, 128, 8
    $region5: #{tpu_custom_call.1} parent=1 // pred_fallthru
      _
    // Predicated region
    $region6: #{tpu_custom_call.1} parent=1 // pred_check
      _
    $region7: #{tpu_custom_call.1} parent=1 // pred_check_branch
      %25 = sbr.rel (0) target = $region9
    $region8: #{tpu_custom_call.1} parent=1 // pred_region
      _
    $region9: #{tpu_custom_call.1} parent=1 // pred_fallthru
      _
    // Predicated region
    $region10: #{tpu_custom_call.1} parent=1 // pred_check
      _
    $region11: #{tpu_custom_call.1} parent=1 // pred_check_branch
      %27 = sbr.rel (0) target = $region13
    $region12: #{tpu_custom_call.1} parent=1 // pred_region
      _
    $region13: #{tpu_custom_call.1} parent=1 // pred_fallthru
      _
    // Predicated region
    $region14: #{tpu_custom_call.1} parent=1 // pred_check
      _
    $region15: #{tpu_custom_call.1} parent=1 // pred_check_branch
      %29 = sbr.rel (0) target = $region17
    $region16: #{tpu_custom_call.1} parent=1 // pred_region
      _
    $region17: #{tpu_custom_call.1} parent=1 // pred_fallthru
      _
    // Predicated region
    $region18: #{tpu_custom_call.1} parent=1 // pred_check
      _
    $region19: #{tpu_custom_call.1} parent=1 // pred_check_branch
      %31 = sbr.rel (0) target = $region21
    $region20: #{tpu_custom_call.1} parent=1 // pred_region
      %33 = dma.done [#allocation3], 256
    $region21: #{tpu_custom_call.1} parent=1 // pred_fallthru
      _
    %v34 = vld [vmem:[#allocation2] sm:$0xff]
    %v35 = vld [vmem:[#allocation2 + $0x8] sm:$0xff]
    %38 = vst [vmem:[#allocation1] ss:$2 sm:$0xff] %v34
    %v39 = vld.sshfl [vmem:[#allocation1] sm:$0xff pattern:$0x75316420]
    %v40 = vld.sshfl [vmem:[#allocation1 + $0x8] sm:$0xff pattern:$0x75316420]
    %s41 = scalar_lea.vmem [#allocation1], 16
    %42 = vst [vmem:[%s41] ss:$2 sm:$0xff] %v35
    %v43 = vld.sshfl [vmem:[#allocation1 + $0x10] sm:$0xff pattern:$0x75316420]
    %v44 = vld.sshfl [vmem:[#allocation1 + $0x18] sm:$0xff pattern:$0x75316420]
    %vm49 = vcmask 1043456
    %v50 = vsel %vm49, %v39, 0.0
    %v51 = vsel %vm49, %v40, 0.0
    %v52 = vadd.f32 %v50, %v51
    %v53 = vsel %vm49, %v43, 0.0
    %v54 = vadd.f32 %v52, %v53
    %v55 = vsel %vm49, %v44, 0.0
    %v56 = vadd.f32 %v54, %v55
    %57 = vadd.xlane.f32.xlu0 %v56
    %v58 = vpop.xlane.xlu0 %57
    %v59 = vmul.f32 %v34, %v34
    %v60 = vmul.f32 %v35, %v35
    %63 = vst [vmem:[#allocation1] ss:$2 sm:$0xff] %v59
    %v64 = vld.sshfl [vmem:[#allocation1] sm:$0xff pattern:$0x75316420]
    %v65 = vld.sshfl [vmem:[#allocation1 + $0x8] sm:$0xff pattern:$0x75316420]
    %s66 = scalar_lea.vmem [#allocation1], 16
    %67 = vst [vmem:[%s66] ss:$2 sm:$0xff] %v60
    %v68 = vld.sshfl [vmem:[#allocation1 + $0x10] sm:$0xff pattern:$0x75316420]
    %v69 = vld.sshfl [vmem:[#allocation1 + $0x18] sm:$0xff pattern:$0x75316420]
    %v74 = vsel %vm49, %v64, 0.0
    %v75 = vsel %vm49, %v65, 0.0
    %v76 = vadd.f32 %v74, %v75
    %v77 = vsel %vm49, %v68, 0.0
    %v78 = vadd.f32 %v76, %v77
    %v79 = vsel %vm49, %v69, 0.0
    %v80 = vadd.f32 %v78, %v79
    %81 = vadd.xlane.f32.xlu0 %v80
    %v82 = vpop.xlane.xlu0 %81
    %v83 = vmul.f32 %v58, 0.001953125
    %v84 = vmul.f32 %v82, 0.001953125
    %v85 = vmul.f32 %v83, %v83
    %v86 = vsub.f32 %v84, %v85
    %v87 = vmax.f32 %v86, 0.0
    %v88 = vadd.f32 %v87, 0.001
    %v89 = vrsqrt.pop %v88
    %v90 = vmul.f32 %v89, %v88
    %v91 = vmul.f32 %v90, %v89
    %v92 = vmul.f32 0.5, %v91
    %v93 = vsub.f32 1.5, %v92
    %v94 = vmul.f32 %v89, %v93
    %vm95 = vweird.f32 %v88
    %vm96 = vweird.f32 %v89
    %vm97 = vmor %vm95, %vm96
    %v98 = vsel %vm97, %v89, %v94
    %v99 = vld [vmem:[%s1] sm:$0xf]
    %v100 = vmul.f32 %v99, %v98
    %v101 = vld [vmem:[%s2] sm:$0xf]
    %v102 = vmul.f32 %v83, %v100
    %v103 = vsub.f32 %v101, %v102
    %v104 = vld [vmem:[%s3] sm:$0xf]
    %106 = vset.pattern.permute.xlu0 0
    %107 = vperm.xlu0 %106, %v100
    %v108 = vpop.permute.xlu0 %107
    %v110 = vunpack.c.l.s4 839922192
    %v111 = vunpack.c.0.s8 %v110
    %v112 = vperm.slane %v108, %v111
    %v114 = vmul.f32 %v34, %v112
    %v115 = vmul.f32 %v35, %v112
    %117 = vset.pattern.permute.xlu0 0
    %118 = vperm.xlu0 %117, %v103
    %v119 = vpop.permute.xlu0 %118
    %v121 = vunpack.c.l.s4 839922192
    %v122 = vunpack.c.0.s8 %v121
    %v123 = vperm.slane %v119, %v122
    %v125 = vadd.f32 %v114, %v123
    %v126 = vadd.f32 %v115, %v123
    %vm127 = vcmp.ge.f32.partialorder %v125, 0.0
    %vm128 = vcmp.ge.f32.partialorder %v126, 0.0
    %130 = vset.pattern.permute.xlu0 0
    %131 = vperm.xlu0 %130, %v104
    %v132 = vpop.permute.xlu0 %131
    %v134 = vunpack.c.l.s4 839922192
    %v135 = vunpack.c.0.s8 %v134
    %v136 = vperm.slane %v132, %v135
    %v138 = vmul.f32 %v125, %v136
    %v139 = vmul.f32 %v126, %v136
    %v140 = vsel %vm127, %v125, %v138
    %v141 = vsel %vm128, %v126, %v139
    %142 = vst [vmem:[#allocation5] sm:$0xff] %v140
    %143 = vst [vmem:[#allocation5 + $0x8] sm:$0xff] %v141
    // Predicated region
    $region22: #{tpu_custom_call.1} parent=1 // pred_check
      _
    $region23: #{tpu_custom_call.1} parent=1 // pred_check_branch
      %145 = sbr.rel (0) target = $region25
    $region24: #{tpu_custom_call.1} parent=1 // pred_region
      %147 = vsyncadd [#allocation4], 0
      %s148 = sshll.u32 [#allocation5], 4
      %s149 = int_to_ptr.vmem [resolvable:$true] %s148
      %s150 = sshll.u32 %s4, 4
      %s151 = int_to_ptr.hbm [resolvable:$true] %s150
      %156 = dma.vmem_to_hbm [thread:$0]  %s149, 256, %s151, [#allocation4], 128, 128, 8
    $region25: #{tpu_custom_call.1} parent=1 // pred_fallthru
      _
    // Predicated region
    $region26: #{tpu_custom_call.1} parent=1 // pred_check
      _
    $region27: #{tpu_custom_call.1} parent=1 // pred_check_branch
      %158 = sbr.rel (0) target = $region29
    $region28: #{tpu_custom_call.1} parent=1 // pred_region
      %160 = dma.done [#allocation4], 256
    $region29: #{tpu_custom_call.1} parent=1 // pred_fallthru
      _
    %161 = vsyncpa [#allocation3], 1
    %162 = vsyncpa [#allocation4], 1

</llo_original>
